<compile_context>
chip_gen: v6e
topology: v6e:2x2x1
jax: 0.10.0
libtpu: 0.0.40
codegen_flags: <defaults>
</compile_context>

<pallas_src>
import jax
import jax.numpy as jnp
from jax.experimental import pallas as pl
from jax.experimental.pallas import tpu as pltpu

HIDDEN = 128          # hidden width of every Linear layer
LANE = 128            # batch maps to lanes; batch tiles are multiples of this
SUB_BF16 = 16         # bf16 sublane packing: pad feature/action dims to this


def _round_up(n, m):
    return ((n + m - 1) // m) * m


def policy_kernel(x_ref, w1_ref, b1_ref, w2_ref, b2_ref,
                  w3_ref, b3_ref, w4_ref, b4_ref, o_ref):
    """Transposed layout: features on sublanes, batch on lanes.

    x_ref: (S_pad, TB) bf16   w{k}_ref: (out, in) bf16 (pre-transposed)
    b{k}_ref: (out, 1) f32    o_ref: (A_pad, TB) f32

    NOTE: Dropout(p=0.6) layers are identity in eval mode.
    TODO(synk): training-mode forward (active dropout) is not implemented here.
    """
    # Linear 1 + ReLU (bf16 MXU operands, f32 accumulate / elementwise)
    h = jnp.dot(w1_ref[...], x_ref[...],
                preferred_element_type=jnp.float32) + b1_ref[...]
    h = jnp.maximum(h, 0.0)
    # Linear 2 + ReLU
    h = jnp.dot(w2_ref[...], h.astype(jnp.bfloat16),
                preferred_element_type=jnp.float32) + b2_ref[...]
    h = jnp.maximum(h, 0.0)
    # Linear 3 + ReLU
    h = jnp.dot(w3_ref[...], h.astype(jnp.bfloat16),
                preferred_element_type=jnp.float32) + b3_ref[...]
    h = jnp.maximum(h, 0.0)
    # Final Linear -> scores (A_pad, TB); padded action rows carry bias -1e30
    scores = jnp.dot(w4_ref[...], h.astype(jnp.bfloat16),
                     preferred_element_type=jnp.float32) + b4_ref[...]
    # Numerically stable softmax over the action (sublane) axis; padded action
    # rows give exp() == 0, so they never touch the denominator.
    m = jnp.max(scores, axis=0, keepdims=True)
    e = jnp.exp(scores - m)
    denom = jnp.sum(e, axis=0, keepdims=True)
    # Exact reciprocal (approx=False): probabilities may feed a sampler.
    o_ref[...] = (e * pl.reciprocal(denom)).astype(o_ref.dtype)


def pack_params(params):
    """One-time packing: transpose, zero-pad and bf16-cast the weights.

    Done outside policy_forward so jit'd calls do not re-materialize the padded
    weights every step (perf review item #1).
    """
    state_dim = params["w1"].shape[0]
    action_dim = params["w4"].shape[1]
    s_pad = _round_up(state_dim, SUB_BF16)
    a_pad = _round_up(action_dim, SUB_BF16)

    def pack_wt(w, rows, cols):
        wt = jnp.zeros((rows, cols), jnp.float32)
        wt = wt.at[:w.shape[1], :w.shape[0]].set(w.T)
        return wt.astype(jnp.bfloat16)                  # bf16 MXU operand

    def pack_b(b, rows, fill):
        bp = jnp.full((rows, 1), fill, jnp.float32)
        return bp.at[:b.shape[1], :].set(b.reshape(-1, 1))

    weights = (
        pack_wt(params["w1"], HIDDEN, s_pad), pack_b(params["b1"], HIDDEN, 0.0),
        pack_wt(params["w2"], HIDDEN, HIDDEN), pack_b(params["b2"], HIDDEN, 0.0),
        pack_wt(params["w3"], HIDDEN, HIDDEN), pack_b(params["b3"], HIDDEN, 0.0),
        pack_wt(params["w4"], a_pad, HIDDEN),
        pack_b(params["b4"], a_pad, -1e30),   # kill padded action rows in softmax
    )
    return dict(weights=weights, state_dim=state_dim, action_dim=action_dim,
                s_pad=s_pad, a_pad=a_pad)


def policy_forward(x, packed, *, max_tile=2048):
    """x: (batch, state_dim) f32.  packed: output of pack_params().

    Returns softmax probabilities of shape (batch, action_dim), f32.
    """
    batch, state_dim = x.shape
    assert state_dim == packed["state_dim"]
    s_pad, a_pad = packed["s_pad"], packed["a_pad"]
    action_dim = packed["action_dim"]
    weights = packed["weights"]

    # Batch tile (in lanes). Big tiles amortize per-grid-step overhead; split
    # so the grid has >= 2 steps (v7x megacore) whenever the batch allows it.
    padded0 = _round_up(batch, LANE)
    tile = min(max_tile, padded0)
    if padded0 > LANE:
        tile = min(tile, _round_up((padded0 + 1) // 2, LANE))
    padded_batch = _round_up(batch, tile)
    grid = (padded_batch // tile,)

    # Lane-dense bf16 x^T: state features on sublanes, batch on lanes.
    xt = jnp.zeros((s_pad, padded_batch), jnp.bfloat16)
    xt = xt.at[:state_dim, :batch].set(x.T.astype(jnp.bfloat16))

    x_spec = pl.BlockSpec((s_pad, tile), lambda i: (0, i))       # tiled on batch
    out_spec = pl.BlockSpec((a_pad, tile), lambda i: (0, i))
    const = lambda a: pl.BlockSpec(a.shape, lambda i: (0, 0))    # VMEM-resident
    in_specs = [x_spec] + [const(a) for a in weights]

    w_bytes = sum(int(a.size) * a.dtype.itemsize for a in weights)
    flops = (2 * padded_batch * HIDDEN * (s_pad + HIDDEN + HIDDEN)
             + 2 * padded_batch * a_pad * HIDDEN)
    cost = pl.CostEstimate(
        flops=flops,
        transcendentals=padded_batch * a_pad,
        bytes_accessed=int(xt.size) * 2 + a_pad * padded_batch * 4 + w_bytes)

    # Scoped-VMEM estimate: double-buffered x/out tiles + weights + f32 temps.
    vmem_need = (2 * s_pad * tile * 2 + 2 * a_pad * tile * 4
                 + w_bytes + 4 * HIDDEN * tile * 4)
    cp_kwargs = dict(dimension_semantics=("parallel",))
    if vmem_need > 12 * 1024 * 1024:        # v5e scoped-VMEM default is 16 MiB
        cp_kwargs["vmem_limit_bytes"] = min(2 * vmem_need, 100 * 1024 * 1024)

    out = pl.pallas_call(
        policy_kernel,
        out_shape=jax.ShapeDtypeStruct((a_pad, padded_batch), jnp.float32),
        grid=grid,
        in_specs=in_specs,
        out_specs=out_spec,
        compiler_params=pltpu.CompilerParams(**cp_kwargs),
        cost_estimate=cost,
    )(xt, *weights)

    return out[:action_dim, :batch].T


def init_params(key, state_dim, action_dim):
    """Deterministic init mimicking nn.Linear's uniform(-1/sqrt(fan_in), +)."""
    def linear(k, fan_in, fan_out):
        kw, kb = jax.random.split(k)
        bound = 1.0 / jnp.sqrt(float(fan_in))
        w = jax.random.uniform(kw, (fan_in, fan_out), jnp.float32, -bound, bound)
        b = jax.random.uniform(kb, (1, fan_out), jnp.float32, -bound, bound)
        return w, b

    k1, k2, k3, k4 = jax.random.split(key, 4)
    w1, b1 = linear(k1, state_dim, HIDDEN)
    w2, b2 = linear(k2, HIDDEN, HIDDEN)
    w3, b3 = linear(k3, HIDDEN, HIDDEN)
    w4, b4 = linear(k4, HIDDEN, action_dim)
    return dict(w1=w1, b1=b1, w2=w2, b2=b2, w3=w3, b3=b3, w4=w4, b4=b4)


def _reference_forward(x, params):
    """Pure-JAX f32 reference (eval-mode: dropout = identity)."""
    h = jnp.maximum(x @ params["w1"] + params["b1"], 0.0)
    h = jnp.maximum(h @ params["w2"] + params["b2"], 0.0)
    h = jnp.maximum(h @ params["w3"] + params["b3"], 0.0)
    s = h @ params["w4"] + params["b4"]
    return jax.nn.softmax(s, axis=1)


if __name__ == "__main__":
    key = jax.random.PRNGKey(0)
    k_x, k_p = jax.random.split(key)

    batch, state_dim, action_dim = 8, 4, 4
    x = jax.random.normal(k_x, (batch, state_dim), dtype=jnp.float32)
    params = init_params(k_p, state_dim, action_dim)
    packed = pack_params(params)          # one-time pad + transpose + bf16 cast

    fwd = jax.jit(lambda xx: policy_forward(xx, packed))
    out = jax.block_until_ready(fwd(x))

    # sanity: shape, softmax rows sum to ~1, matches f32 reference (bf16 tol)
    assert out.shape == (batch, action_dim)
    assert jnp.allclose(jnp.sum(out, axis=1), 1.0, atol=5e-3)
    ref = _reference_forward(x, params)
    assert jnp.allclose(out, ref, atol=3e-2), float(jnp.max(jnp.abs(out - ref)))

    print("KERNEL_OK")
</pallas_src>

<mosaic_0001>
module attributes {stable_mosaic.version = 11 : i64} {
  func.func @policy_kernel(%arg0: i32, %arg1: memref<16x128xbf16, #tpu.memory_space<vmem>>, %arg2: memref<128x16xbf16, #tpu.memory_space<vmem>>, %arg3: memref<128x1xf32, #tpu.memory_space<vmem>>, %arg4: memref<128x128xbf16, #tpu.memory_space<vmem>>, %arg5: memref<128x1xf32, #tpu.memory_space<vmem>>, %arg6: memref<128x128xbf16, #tpu.memory_space<vmem>>, %arg7: memref<128x1xf32, #tpu.memory_space<vmem>>, %arg8: memref<16x128xbf16, #tpu.memory_space<vmem>>, %arg9: memref<16x1xf32, #tpu.memory_space<vmem>>, %arg10: memref<16x128xf32, #tpu.memory_space<vmem>>) attributes {dimension_semantics = [#tpu.dimension_semantics<parallel>], iteration_bounds = array<i64: 1>, scalar_prefetch = 0 : i64, scratch_operands = 0 : i64, tpu.core_type = #tpu.core_type<tc>, window_params = [{transform_indices = @transform_0, window_bounds = array<i64: 16, 128>}, {pipeline_mode = #tpu.pipeline_mode<synchronous>, transform_indices = @transform_1, window_bounds = array<i64: 128, 16>}, {pipeline_mode = #tpu.pipeline_mode<synchronous>, transform_indices = @transform_2, window_bounds = array<i64: 128, 1>}, {pipeline_mode = #tpu.pipeline_mode<synchronous>, transform_indices = @transform_3, window_bounds = array<i64: 128, 128>}, {pipeline_mode = #tpu.pipeline_mode<synchronous>, transform_indices = @transform_4, window_bounds = array<i64: 128, 1>}, {pipeline_mode = #tpu.pipeline_mode<synchronous>, transform_indices = @transform_5, window_bounds = array<i64: 128, 128>}, {pipeline_mode = #tpu.pipeline_mode<synchronous>, transform_indices = @transform_6, window_bounds = array<i64: 128, 1>}, {pipeline_mode = #tpu.pipeline_mode<synchronous>, transform_indices = @transform_7, window_bounds = array<i64: 16, 128>}, {pipeline_mode = #tpu.pipeline_mode<synchronous>, transform_indices = @transform_8, window_bounds = array<i64: 16, 1>}, {transform_indices = @transform_9, window_bounds = array<i64: 16, 128>}]} {
    %c0 = arith.constant 0 : index
    %c0_0 = arith.constant 0 : index
    %0 = vector.load %arg2[%c0, %c0_0] : memref<128x16xbf16, #tpu.memory_space<vmem>>, vector<128x16xbf16>
    %c0_1 = arith.constant 0 : index
    %c0_2 = arith.constant 0 : index
    %1 = vector.load %arg1[%c0_1, %c0_2] : memref<16x128xbf16, #tpu.memory_space<vmem>>, vector<16x128xbf16>
    %cst = arith.constant dense<0.000000e+00> : vector<128x128xf32>
    %2 = tpu.matmul %0, %1, %cst {dimension_numbers = #tpu.dot_dimension_numbers<[1], [0], [0], [1], [0, 0, 1, 1], [], []>} : vector<128x16xbf16>, vector<16x128xbf16>, vector<128x128xf32> -> vector<128x128xf32>
    %c0_3 = arith.constant 0 : index
    %c0_4 = arith.constant 0 : index
    %3 = vector.load %arg3[%c0_3, %c0_4] : memref<128x1xf32, #tpu.memory_space<vmem>>, vector<128x1xf32>
    %4 = vector.broadcast %3 : vector<128x1xf32> to vector<128x128xf32>
    %5 = arith.addf %2, %4 : vector<128x128xf32>
    %cst_5 = arith.constant 0.000000e+00 : f32
    %6 = vector.broadcast %cst_5 : f32 to vector<128x128xf32>
    %7 = arith.maximumf %5, %6 : vector<128x128xf32>
    %c0_6 = arith.constant 0 : index
    %c0_7 = arith.constant 0 : index
    %8 = vector.load %arg4[%c0_6, %c0_7] : memref<128x128xbf16, #tpu.memory_space<vmem>>, vector<128x128xbf16>
    %9 = arith.truncf %7 : vector<128x128xf32> to vector<128x128xbf16>
    %cst_8 = arith.constant dense<0.000000e+00> : vector<128x128xf32>
    %10 = tpu.matmul %8, %9, %cst_8 {dimension_numbers = #tpu.dot_dimension_numbers<[1], [0], [0], [1], [0, 0, 1, 1], [], []>} : vector<128x128xbf16>, vector<128x128xbf16>, vector<128x128xf32> -> vector<128x128xf32>
    %c0_9 = arith.constant 0 : index
    %c0_10 = arith.constant 0 : index
    %11 = vector.load %arg5[%c0_9, %c0_10] : memref<128x1xf32, #tpu.memory_space<vmem>>, vector<128x1xf32>
    %12 = vector.broadcast %11 : vector<128x1xf32> to vector<128x128xf32>
    %13 = arith.addf %10, %12 : vector<128x128xf32>
    %cst_11 = arith.constant 0.000000e+00 : f32
    %14 = vector.broadcast %cst_11 : f32 to vector<128x128xf32>
    %15 = arith.maximumf %13, %14 : vector<128x128xf32>
    %c0_12 = arith.constant 0 : index
    %c0_13 = arith.constant 0 : index
    %16 = vector.load %arg6[%c0_12, %c0_13] : memref<128x128xbf16, #tpu.memory_space<vmem>>, vector<128x128xbf16>
    %17 = arith.truncf %15 : vector<128x128xf32> to vector<128x128xbf16>
    %cst_14 = arith.constant dense<0.000000e+00> : vector<128x128xf32>
    %18 = tpu.matmul %16, %17, %cst_14 {dimension_numbers = #tpu.dot_dimension_numbers<[1], [0], [0], [1], [0, 0, 1, 1], [], []>} : vector<128x128xbf16>, vector<128x128xbf16>, vector<128x128xf32> -> vector<128x128xf32>
    %c0_15 = arith.constant 0 : index
    %c0_16 = arith.constant 0 : index
    %19 = vector.load %arg7[%c0_15, %c0_16] : memref<128x1xf32, #tpu.memory_space<vmem>>, vector<128x1xf32>
    %20 = vector.broadcast %19 : vector<128x1xf32> to vector<128x128xf32>
    %21 = arith.addf %18, %20 : vector<128x128xf32>
    %cst_17 = arith.constant 0.000000e+00 : f32
    %22 = vector.broadcast %cst_17 : f32 to vector<128x128xf32>
    %23 = arith.maximumf %21, %22 : vector<128x128xf32>
    %c0_18 = arith.constant 0 : index
    %c0_19 = arith.constant 0 : index
    %24 = vector.load %arg8[%c0_18, %c0_19] : memref<16x128xbf16, #tpu.memory_space<vmem>>, vector<16x128xbf16>
    %25 = arith.truncf %23 : vector<128x128xf32> to vector<128x128xbf16>
    %cst_20 = arith.constant dense<0.000000e+00> : vector<16x128xf32>
    %26 = tpu.matmul %24, %25, %cst_20 {dimension_numbers = #tpu.dot_dimension_numbers<[1], [0], [0], [1], [0, 0, 1, 1], [], []>} : vector<16x128xbf16>, vector<128x128xbf16>, vector<16x128xf32> -> vector<16x128xf32>
    %c0_21 = arith.constant 0 : index
    %c0_22 = arith.constant 0 : index
    %27 = vector.load %arg9[%c0_21, %c0_22] : memref<16x1xf32, #tpu.memory_space<vmem>>, vector<16x1xf32>
    %28 = vector.broadcast %27 : vector<16x1xf32> to vector<16x128xf32>
    %29 = arith.addf %26, %28 : vector<16x128xf32>
    %cst_23 = arith.constant dense<0xFF800000> : vector<128xf32>
    %30 = vector.multi_reduction <maximumf>, %29, %cst_23 [0] : vector<16x128xf32> to vector<128xf32>
    %31 = vector.shape_cast %30 : vector<128xf32> to vector<1x128xf32>
    %32 = vector.broadcast %31 : vector<1x128xf32> to vector<16x128xf32>
    %33 = arith.subf %29, %32 : vector<16x128xf32>
    %34 = math.exp %33 : vector<16x128xf32>
    %cst_24 = arith.constant dense<0.000000e+00> : vector<128xf32>
    %35 = vector.multi_reduction <add>, %34, %cst_24 [0] : vector<16x128xf32> to vector<128xf32>
    %36 = vector.shape_cast %35 : vector<128xf32> to vector<1x128xf32>
    %37 = tpu.reciprocal %36 : vector<1x128xf32> -> vector<1x128xf32>
    %38 = vector.broadcast %37 : vector<1x128xf32> to vector<16x128xf32>
    %39 = arith.mulf %34, %38 : vector<16x128xf32>
    %c0_25 = arith.constant 0 : index
    %c0_26 = arith.constant 0 : index
    %40 = vector.load %arg10[%c0_25, %c0_26] : memref<16x128xf32, #tpu.memory_space<vmem>>, vector<16x128xf32>
    tpu.vector_store %arg10[%c0_25, %c0_26], %39 {strides = array<i32>} : memref<16x128xf32, #tpu.memory_space<vmem>>, vector<16x128xf32>,
    return
  }
  func.func @transform_0(%arg0: i32) -> (i32, i32) {
    %c0_i32 = arith.constant 0 : i32
    %c0_i32_0 = arith.constant 0 : i32
    return %c0_i32, %arg0 : i32, i32
  }
  func.func @transform_1(%arg0: i32) -> (i32, i32) {
    %c0_i32 = arith.constant 0 : i32
    %c0_i32_0 = arith.constant 0 : i32
    %c0_i32_1 = arith.constant 0 : i32
    return %c0_i32, %c0_i32_0 : i32, i32
  }
  func.func @transform_2(%arg0: i32) -> (i32, i32) {
    %c0_i32 = arith.constant 0 : i32
    %c0_i32_0 = arith.constant 0 : i32
    %c0_i32_1 = arith.constant 0 : i32
    return %c0_i32, %c0_i32_0 : i32, i32
  }
  func.func @transform_3(%arg0: i32) -> (i32, i32) {
    %c0_i32 = arith.constant 0 : i32
    %c0_i32_0 = arith.constant 0 : i32
    %c0_i32_1 = arith.constant 0 : i32
    return %c0_i32, %c0_i32_0 : i32, i32
  }
  func.func @transform_4(%arg0: i32) -> (i32, i32) {
    %c0_i32 = arith.constant 0 : i32
    %c0_i32_0 = arith.constant 0 : i32
    %c0_i32_1 = arith.constant 0 : i32
    return %c0_i32, %c0_i32_0 : i32, i32
  }
  func.func @transform_5(%arg0: i32) -> (i32, i32) {
    %c0_i32 = arith.constant 0 : i32
    %c0_i32_0 = arith.constant 0 : i32
    %c0_i32_1 = arith.constant 0 : i32
    return %c0_i32, %c0_i32_0 : i32, i32
  }
  func.func @transform_6(%arg0: i32) -> (i32, i32) {
    %c0_i32 = arith.constant 0 : i32
    %c0_i32_0 = arith.constant 0 : i32
    %c0_i32_1 = arith.constant 0 : i32
    return %c0_i32, %c0_i32_0 : i32, i32
  }
  func.func @transform_7(%arg0: i32) -> (i32, i32) {
    %c0_i32 = arith.constant 0 : i32
    %c0_i32_0 = arith.constant 0 : i32
    %c0_i32_1 = arith.constant 0 : i32
    return %c0_i32, %c0_i32_0 : i32, i32
  }
  func.func @transform_8(%arg0: i32) -> (i32, i32) {
    %c0_i32 = arith.constant 0 : i32
    %c0_i32_0 = arith.constant 0 : i32
    %c0_i32_1 = arith.constant 0 : i32
    return %c0_i32, %c0_i32_0 : i32, i32
  }
  func.func @transform_9(%arg0: i32) -> (i32, i32) {
    %c0_i32 = arith.constant 0 : i32
    %c0_i32_0 = arith.constant 0 : i32
    return %c0_i32, %arg0 : i32, i32
  }
}

</mosaic_0001>

<llo_original>
// kernel: _lambda_.1
$region0: #{_lambda_.1}
  #allocation0 [shape = 'u32[]', space=smem, size = 0x4, offset = 0x4, fixed_abs, tag = 'smem constant byte address 0x4 - core index']
  #allocation1 [shape = 'u32[144,128]{1,0:T(1,128)}', space=vmem, size = 0x12000, scoped, tag = 'internal scratch']
  %s0 = inlined_call_operand.vmem [shape: bf16[16,128], index: 0, kind: input, shape index: {}]
  %s1 = inlined_call_operand.hbm [shape: bf16[128,16], index: 1, kind: input, shape index: {}]
  %s2 = inlined_call_operand.hbm [shape: f32[128,1], index: 2, kind: input, shape index: {}]
  %s3 = inlined_call_operand.hbm [shape: bf16[128,128], index: 3, kind: input, shape index: {}]
  %s4 = inlined_call_operand.hbm [shape: f32[128,1], index: 4, kind: input, shape index: {}]
  %s5 = inlined_call_operand.hbm [shape: bf16[128,128], index: 5, kind: input, shape index: {}]
  %s6 = inlined_call_operand.hbm [shape: f32[128,1], index: 6, kind: input, shape index: {}]
  %s7 = inlined_call_operand.vmem [shape: bf16[16,128], index: 7, kind: input, shape index: {}]
  %s8 = inlined_call_operand.vmem [shape: f32[16,1], index: 8, kind: input, shape index: {}]
  %s9 = inlined_call_operand.vmem [shape: f32[16,128], index: 9, kind: output, shape index: {}]
  %s10 = sld [smem:[#allocation0]]
  $region70: #{_lambda_.1} parent=0
    _
  %s12 = ssub.s32 1, %s10
  %s13 = scalar_select 0, %s12, %s10
  $region1: #{_lambda_.1} parent=0
    #allocation2 [shape = 'u8[32768]{0}', space=vmem, size = 0x8000, scoped, tag = 'input window, operand 1, single buffered']
    #allocation3 [shape = 's32[1]{0}', space=sflag, size = 0x4, scoped, tag = 'scoped memory for _lambda_.1']
    #allocation4 [shape = 'u8[65536]{0}', space=vmem, size = 0x10000, scoped, tag = 'input window, operand 2, single buffered']
    #allocation5 [shape = 's32[1]{0}', space=sflag, size = 0x4, scoped, tag = 'scoped memory for _lambda_.1']
    #allocation6 [shape = 'u8[32768]{0}', space=vmem, size = 0x8000, scoped, tag = 'input window, operand 3, single buffered']
    #allocation7 [shape = 'u8[65536]{0}', space=vmem, size = 0x10000, scoped, tag = 'input window, operand 4, single buffered']
    #allocation8 [shape = 's32[1]{0}', space=sflag, size = 0x4, scoped, tag = 'scoped memory for _lambda_.1']
    #allocation9 [shape = 'u8[32768]{0}', space=vmem, size = 0x8000, scoped, tag = 'input window, operand 5, single buffered']
    #allocation10 [shape = 'u8[65536]{0}', space=vmem, size = 0x10000, scoped, tag = 'input window, operand 6, single buffered']
    #allocation11 [shape = 's32[1]{0}', space=sflag, size = 0x4, scoped, tag = 'scoped memory for _lambda_.1']
    %14 = vsyncpa [#allocation3], 0
    %15 = vsyncpa [#allocation5], 0
    %16 = vsyncpa [#allocation8], 0
    %17 = vsyncpa [#allocation11], 0
    // Predicated region
    $region2: #{_lambda_.1} parent=1 // pred_check
      _
    $region3: #{_lambda_.1} parent=1 // pred_check_branch
      %19 = sbr.rel (0) target = $region5
    $region4: #{_lambda_.1} parent=1 // pred_region
      _
    $region5: #{_lambda_.1} parent=1 // pred_fallthru
      _
    // Predicated region
    $region6: #{_lambda_.1} parent=1 // pred_check
      _
    $region7: #{_lambda_.1} parent=1 // pred_check_branch
      %21 = sbr.rel (0) target = $region9
    $region8: #{_lambda_.1} parent=1 // pred_region
      %s23 = ssub.s32 1024, 1024
      %24 = vsyncadd [#allocation3], %s23
      %s25 = sshll.u32 [#allocation2], 4
      %s26 = int_to_ptr.vmem [resolvable:$true] %s25
      %31 = dma.hbm_to_vmem [thread:$0]  %s1, 1024, %s26, [#allocation3], 64, 64, 4
    $region9: #{_lambda_.1} parent=1 // pred_fallthru
      _
    // Predicated region
    $region10: #{_lambda_.1} parent=1 // pred_check
      _
    $region11: #{_lambda_.1} parent=1 // pred_check_branch
      %33 = sbr.rel (0) target = $region13
    $region12: #{_lambda_.1} parent=1 // pred_region
      %s35 = ssub.s32 2048, 2048
      %36 = vsyncadd [#allocation5], %s35
      %s37 = sshll.u32 [#allocation4], 4
      %s38 = int_to_ptr.vmem [resolvable:$true] %s37
      %43 = dma.hbm_to_vmem [thread:$0]  %s2, 2048, %s38, [#allocation5], 128, 128, 8
    $region13: #{_lambda_.1} parent=1 // pred_fallthru
      _
    // Predicated region
    $region14: #{_lambda_.1} parent=1 // pred_check
      _
    $region15: #{_lambda_.1} parent=1 // pred_check_branch
      %45 = sbr.rel (0) target = $region17
    $region16: #{_lambda_.1} parent=1 // pred_region
      %s47 = ssub.s32 1024, 1024
      %48 = vsyncadd [#allocation5], %s47
      %s49 = sshll.u32 [#allocation6], 4
      %s50 = int_to_ptr.vmem [resolvable:$true] %s49
      %55 = dma.hbm_to_vmem [thread:$0]  %s3, 1024, %s50, [#allocation5], 64, 64, 4
    $region17: #{_lambda_.1} parent=1 // pred_fallthru
      _
    // Predicated region
    $region18: #{_lambda_.1} parent=1 // pred_check
      _
    $region19: #{_lambda_.1} parent=1 // pred_check_branch
      %57 = sbr.rel (0) target = $region21
    $region20: #{_lambda_.1} parent=1 // pred_region
      %s59 = ssub.s32 2048, 2048
      %60 = vsyncadd [#allocation8], %s59
      %s61 = sshll.u32 [#allocation7], 4
      %s62 = int_to_ptr.vmem [resolvable:$true] %s61
      %67 = dma.hbm_to_vmem [thread:$0]  %s4, 2048, %s62, [#allocation8], 128, 128, 8
    $region21: #{_lambda_.1} parent=1 // pred_fallthru
      _
    // Predicated region
    $region22: #{_lambda_.1} parent=1 // pred_check
      _
    $region23: #{_lambda_.1} parent=1 // pred_check_branch
      %69 = sbr.rel (0) target = $region25
    $region24: #{_lambda_.1} parent=1 // pred_region
      %s71 = ssub.s32 1024, 1024
      %72 = vsyncadd [#allocation8], %s71
      %s73 = sshll.u32 [#allocation9], 4
      %s74 = int_to_ptr.vmem [resolvable:$true] %s73
      %79 = dma.hbm_to_vmem [thread:$0]  %s5, 1024, %s74, [#allocation8], 64, 64, 4
    $region25: #{_lambda_.1} parent=1 // pred_fallthru
      _
    // Predicated region
    $region26: #{_lambda_.1} parent=1 // pred_check
      _
    $region27: #{_lambda_.1} parent=1 // pred_check_branch
      %81 = sbr.rel (0) target = $region29
    $region28: #{_lambda_.1} parent=1 // pred_region
      %s83 = ssub.s32 2048, 2048
      %84 = vsyncadd [#allocation11], %s83
      %s85 = sshll.u32 [#allocation10], 4
      %s86 = int_to_ptr.vmem [resolvable:$true] %s85
      %91 = dma.hbm_to_vmem [thread:$0]  %s6, 2048, %s86, [#allocation11], 128, 128, 8
    $region29: #{_lambda_.1} parent=1 // pred_fallthru
      _
    // Predicated region
    $region30: #{_lambda_.1} parent=1 // pred_check
      _
    $region31: #{_lambda_.1} parent=1 // pred_check_branch
      %93 = sbr.rel (0) target = $region33
    $region32: #{_lambda_.1} parent=1 // pred_region
      _
    $region33: #{_lambda_.1} parent=1 // pred_fallthru
      _
    // Predicated region
    $region34: #{_lambda_.1} parent=1 // pred_check
      _
    $region35: #{_lambda_.1} parent=1 // pred_check_branch
      %95 = sbr.rel (0) target = $region37
    $region36: #{_lambda_.1} parent=1 // pred_region
      _
    $region37: #{_lambda_.1} parent=1 // pred_fallthru
      _
    // Predicated region
    $region38: #{_lambda_.1} parent=1 // pred_check
      _
    $region39: #{_lambda_.1} parent=1 // pred_check_branch
      %97 = sbr.rel (0) target = $region41
    $region40: #{_lambda_.1} parent=1 // pred_region
      %98 = dma.done [#allocation3], 1024
    $region41: #{_lambda_.1} parent=1 // pred_fallthru
      _
    // Predicated region
    $region42: #{_lambda_.1} parent=1 // pred_check
      _
    $region43: #{_lambda_.1} parent=1 // pred_check_branch
      %100 = sbr.rel (0) target = $region45
    $region44: #{_lambda_.1} parent=1 // pred_region
      %101 = dma.done [#allocation5], 2048
    $region45: #{_lambda_.1} parent=1 // pred_fallthru
      _
    // Predicated region
    $region46: #{_lambda_.1} parent=1 // pred_check
      _
    $region47: #{_lambda_.1} parent=1 // pred_check_branch
      %103 = sbr.rel (0) target = $region49
    $region48: #{_lambda_.1} parent=1 // pred_region
      %104 = dma.done [#allocation5], 1024
    $region49: #{_lambda_.1} parent=1 // pred_fallthru
      _
    // Predicated region
    $region50: #{_lambda_.1} parent=1 // pred_check
      _
    $region51: #{_lambda_.1} parent=1 // pred_check_branch
      %106 = sbr.rel (0) target = $region53
    $region52: #{_lambda_.1} parent=1 // pred_region
      %107 = dma.done [#allocation8], 2048
    $region53: #{_lambda_.1} parent=1 // pred_fallthru
      _
    // Predicated region
    $region54: #{_lambda_.1} parent=1 // pred_check
      _
    $region55: #{_lambda_.1} parent=1 // pred_check_branch
      %109 = sbr.rel (0) target = $region57
    $region56: #{_lambda_.1} parent=1 // pred_region
      %110 = dma.done [#allocation8], 1024
    $region57: #{_lambda_.1} parent=1 // pred_fallthru
      _
    // Predicated region
    $region58: #{_lambda_.1} parent=1 // pred_check
      _
    $region59: #{_lambda_.1} parent=1 // pred_check_branch
      %112 = sbr.rel (0) target = $region61
    $region60: #{_lambda_.1} parent=1 // pred_region
      %113 = dma.done [#allocation11], 2048
    $region61: #{_lambda_.1} parent=1 // pred_fallthru
      _
    %v115 = vld [vmem:[#allocation2] sm:$0xf]
    %v116 = vld [vmem:[#allocation2 + $0x4] sm:$0xf]
    %v117 = vld [vmem:[#allocation2 + $0x8] sm:$0xf]
    %v118 = vld [vmem:[#allocation2 + $0xc] sm:$0xf]
    %v119 = vld [vmem:[#allocation2 + $0x10] sm:$0xf]
    %v120 = vld [vmem:[#allocation2 + $0x14] sm:$0xf]
    %v121 = vld [vmem:[#allocation2 + $0x18] sm:$0xf]
    %v122 = vld [vmem:[#allocation2 + $0x1c] sm:$0xf]
    %v123 = vld [vmem:[#allocation2 + $0x20] sm:$0xf]
    %v124 = vld [vmem:[#allocation2 + $0x24] sm:$0xf]
    %v125 = vld [vmem:[#allocation2 + $0x28] sm:$0xf]
    %v126 = vld [vmem:[#allocation2 + $0x2c] sm:$0xf]
    %v127 = vld [vmem:[#allocation2 + $0x30] sm:$0xf]
    %v128 = vld [vmem:[#allocation2 + $0x34] sm:$0xf]
    %v129 = vld [vmem:[#allocation2 + $0x38] sm:$0xf]
    %v130 = vld [vmem:[#allocation2 + $0x3c] sm:$0xf]
    %v131 = vld [vmem:[%s0] sm:$0xf]
    %v132 = vld [vmem:[%s0 + $0x4] sm:$0xf]
    %v133 = vld [vmem:[#allocation4] sm:$0xff]
    %v134 = vld [vmem:[#allocation4 + $0x8] sm:$0xff]
    %v135 = vld [vmem:[#allocation4 + $0x10] sm:$0xff]
    %v136 = vld [vmem:[#allocation4 + $0x18] sm:$0xff]
    %v137 = vld [vmem:[#allocation4 + $0x20] sm:$0xff]
    %v138 = vld [vmem:[#allocation4 + $0x28] sm:$0xff]
    %v139 = vld [vmem:[#allocation4 + $0x30] sm:$0xff]
    %v140 = vld [vmem:[#allocation4 + $0x38] sm:$0xff]
    %v141 = vld [vmem:[#allocation4 + $0x40] sm:$0xff]
    %v142 = vld [vmem:[#allocation4 + $0x48] sm:$0xff]
    %v143 = vld [vmem:[#allocation4 + $0x50] sm:$0xff]
    %v144 = vld [vmem:[#allocation4 + $0x58] sm:$0xff]
    %v145 = vld [vmem:[#allocation4 + $0x60] sm:$0xff]
    %v146 = vld [vmem:[#allocation4 + $0x68] sm:$0xff]
    %v147 = vld [vmem:[#allocation4 + $0x70] sm:$0xff]
    %v148 = vld [vmem:[#allocation4 + $0x78] sm:$0xff]
    %150 = vset.pattern.permute.xlu0 0
    %151 = vperm.xlu0 %150, %v133
    %v152 = vpop.permute.xlu0 %151
    %155 = vset.pattern.permute.xlu0 0
    %156 = vperm.xlu0 %155, %v134
    %v157 = vpop.permute.xlu0 %156
    %160 = vset.pattern.permute.xlu0 0
    %161 = vperm.xlu0 %160, %v135
    %v162 = vpop.permute.xlu0 %161
    %165 = vset.pattern.permute.xlu0 0
    %166 = vperm.xlu0 %165, %v136
    %v167 = vpop.permute.xlu0 %166
    %170 = vset.pattern.permute.xlu0 0
    %171 = vperm.xlu0 %170, %v137
    %v172 = vpop.permute.xlu0 %171
    %175 = vset.pattern.permute.xlu0 0
    %176 = vperm.xlu0 %175, %v138
    %v177 = vpop.permute.xlu0 %176
    %180 = vset.pattern.permute.xlu0 0
    %181 = vperm.xlu0 %180, %v139
    %v182 = vpop.permute.xlu0 %181
    %185 = vset.pattern.permute.xlu0 0
    %186 = vperm.xlu0 %185, %v140
    %v187 = vpop.permute.xlu0 %186
    %190 = vset.pattern.permute.xlu0 0
    %191 = vperm.xlu0 %190, %v141
    %v192 = vpop.permute.xlu0 %191
    %195 = vset.pattern.permute.xlu0 0
    %196 = vperm.xlu0 %195, %v142
    %v197 = vpop.permute.xlu0 %196
    %200 = vset.pattern.permute.xlu0 0
    %201 = vperm.xlu0 %200, %v143
    %v202 = vpop.permute.xlu0 %201
    %205 = vset.pattern.permute.xlu0 0
    %206 = vperm.xlu0 %205, %v144
    %v207 = vpop.permute.xlu0 %206
    %210 = vset.pattern.permute.xlu0 0
    %211 = vperm.xlu0 %210, %v145
    %v212 = vpop.permute.xlu0 %211
    %215 = vset.pattern.permute.xlu0 0
    %216 = vperm.xlu0 %215, %v146
    %v217 = vpop.permute.xlu0 %216
    %220 = vset.pattern.permute.xlu0 0
    %221 = vperm.xlu0 %220, %v147
    %v222 = vpop.permute.xlu0 %221
    %225 = vset.pattern.permute.xlu0 0
    %226 = vperm.xlu0 %225, %v148
    %v227 = vpop.permute.xlu0 %226
    %v245 = vunpack.c.l.b16 %v115
    %v246 = vunpack.c.l.b16 %v116
    %v247 = vunpack.c.l.b16 %v117
    %v248 = vunpack.c.l.b16 %v118
    %v249 = vunpack.c.l.b16 %v119
    %v250 = vunpack.c.l.b16 %v120
    %v251 = vunpack.c.l.b16 %v121
    %v252 = vunpack.c.l.b16 %v122
    %v253 = vunpack.c.l.b16 %v123
    %v254 = vunpack.c.l.b16 %v124
    %v255 = vunpack.c.l.b16 %v125
    %v256 = vunpack.c.l.b16 %v126
    %v257 = vunpack.c.l.b16 %v127
    %v258 = vunpack.c.l.b16 %v128
    %v259 = vunpack.c.l.b16 %v129
    %v260 = vunpack.c.l.b16 %v130
    %v261 = vpack.c.b16 %v246, %v245
    %v262 = vpack.c.b16 %v248, %v247
    %v263 = vpack.c.b16 %v250, %v249
    %v264 = vpack.c.b16 %v252, %v251
    %v265 = vpack.c.b16 %v254, %v253
    %v266 = vpack.c.b16 %v256, %v255
    %v267 = vpack.c.b16 %v258, %v257
    %v268 = vpack.c.b16 %v260, %v259
    %v271 = vunpack.c.l.b16 %v131
    %v272 = vunpack.c.l.b16 %v132
    %v273 = vpack.c.b16 %v272, %v271
    %vm275 = vcmask 130048
    %v277 = vsel %vm275, %v261, 0
    %v280 = vsel %vm275, %v262, 0
    %v283 = vsel %vm275, %v263, 0
    %v286 = vsel %vm275, %v264, 0
    %v289 = vsel %vm275, %v265, 0
    %v292 = vsel %vm275, %v266, 0
    %v295 = vsel %vm275, %v267, 0
    %v298 = vsel %vm275, %v268, 0
    %300 = vmatprep.subr.bf16.mxu0 0
    %301 = vmatpush1.bf16.msra.mxu0 0
    %302 = vmatprep.subr.bf16.mxu0 0
    %303 = vmatpush1.bf16.msra.mxu0 0
    %304 = vmatprep.subr.bf16.mxu0 0
    %305 = vmatpush1.bf16.msra.mxu0 0
    %306 = vmatprep.subr.bf16.mxu0 0
    %307 = vmatpush1.bf16.msra.mxu0 0
    %308 = vmatprep.subr.bf16.mxu0 0
    %309 = vmatpush1.bf16.msra.mxu0 0
    %310 = vmatprep.subr.bf16.mxu0 0
    %311 = vmatpush1.bf16.msra.mxu0 0
    %312 = vmatprep.subr.bf16.mxu0 0
    %313 = vmatpush1.bf16.msra.mxu0 0
    %314 = vmatprep.subr.bf16.mxu0 0
    %315 = vmatpush1.bf16.msra.mxu0 %v273
    %316 = vmatprep.subr.bf16.mxu0 0
    %317 = vmatpush2.bf16.msra.mxu0 0
    %318 = vmatprep.subr.bf16.mxu0 0
    %319 = vmatpush2.bf16.msra.mxu0 0
    %320 = vmatprep.subr.bf16.mxu0 0
    %321 = vmatpush2.bf16.msra.mxu0 0
    %322 = vmatprep.subr.bf16.mxu0 0
    %323 = vmatpush2.bf16.msra.mxu0 0
    %324 = vmatprep.subr.bf16.mxu0 0
    %325 = vmatpush2.bf16.msra.mxu0 0
    %326 = vmatprep.subr.bf16.mxu0 0
    %327 = vmatpush2.bf16.msra.mxu0 0
    %328 = vmatprep.subr.bf16.mxu0 0
    %329 = vmatpush2.bf16.msra.mxu0 0
    %330 = vmatprep.subr.bf16.mxu0 0
    %331 = vmatpush2.bf16.msra.mxu0 0
    %332 = vmatprep.mubr.bf16.mxu0 0
    %333 = vmatmul.mubr.bf16.gmra.mxu0 %v277
    %v334 = vpop.f32.mrf.mxu0
    %v335 = vadd.f32 %v152, %v334
    %v336 = vpop.f32.mrf.mxu0
    %v337 = vpop.f32.mrf.mxu0
    %v338 = vadd.f32 %v157, %v337
    %v339 = vpop.f32.mrf.mxu0
    %340 = vmatprep.mubr.bf16.mxu0 0
    %341 = vmatmul.mubr.bf16.gmra.mxu0 %v280
    %v342 = vpop.f32.mrf.mxu0
    %v343 = vadd.f32 %v162, %v342
    %v344 = vpop.f32.mrf.mxu0
    %v345 = vpop.f32.mrf.mxu0
    %v346 = vadd.f32 %v167, %v345
    %v347 = vpop.f32.mrf.mxu0
    %348 = vmatprep.mubr.bf16.mxu0 0
    %349 = vmatmul.mubr.bf16.gmra.mxu0 %v283
    %v350 = vpop.f32.mrf.mxu0
    %v351 = vadd.f32 %v172, %v350
    %v352 = vpop.f32.mrf.mxu0
    %v353 = vpop.f32.mrf.mxu0
    %v354 = vadd.f32 %v177, %v353
    %v355 = vpop.f32.mrf.mxu0
    %356 = vmatprep.mubr.bf16.mxu0 0
    %357 = vmatmul.mubr.bf16.gmra.mxu0 %v286
    %v358 = vpop.f32.mrf.mxu0
    %v359 = vadd.f32 %v182, %v358
    %v360 = vpop.f32.mrf.mxu0
    %v361 = vpop.f32.mrf.mxu0
    %v362 = vadd.f32 %v187, %v361
    %v363 = vpop.f32.mrf.mxu0
    %364 = vmatprep.mubr.bf16.mxu0 0
    %365 = vmatmul.mubr.bf16.gmra.mxu0 %v289
    %v366 = vpop.f32.mrf.mxu0
    %v367 = vadd.f32 %v192, %v366
    %v368 = vpop.f32.mrf.mxu0
    %v369 = vpop.f32.mrf.mxu0
    %v370 = vadd.f32 %v197, %v369
    %v371 = vpop.f32.mrf.mxu0
    %372 = vmatprep.mubr.bf16.mxu0 0
    %373 = vmatmul.mubr.bf16.gmra.mxu0 %v292
    %v374 = vpop.f32.mrf.mxu0
    %v375 = vadd.f32 %v202, %v374
    %v376 = vpop.f32.mrf.mxu0
    %v377 = vpop.f32.mrf.mxu0
    %v378 = vadd.f32 %v207, %v377
    %v379 = vpop.f32.mrf.mxu0
    %380 = vmatprep.mubr.bf16.mxu0 0
    %381 = vmatmul.mubr.bf16.gmra.mxu0 %v295
    %v382 = vpop.f32.mrf.mxu0
    %v383 = vadd.f32 %v212, %v382
    %v384 = vpop.f32.mrf.mxu0
    %v385 = vpop.f32.mrf.mxu0
    %v386 = vadd.f32 %v217, %v385
    %v387 = vpop.f32.mrf.mxu0
    %388 = vmatprep.mubr.bf16.mxu0 0
    %389 = vmatmul.mubr.bf16.gmra.mxu0 %v298
    %v390 = vpop.f32.mrf.mxu0
    %v391 = vadd.f32 %v222, %v390
    %v392 = vpop.f32.mrf.mxu0
    %v393 = vpop.f32.mrf.mxu0
    %v394 = vadd.f32 %v227, %v393
    %v395 = vpop.f32.mrf.mxu0
    %396 = vdwg.mxu0
    %v397 = vmax.f32 %v335, 0.0
    %v398 = vmax.f32 %v338, 0.0
    %v399 = vmax.f32 %v343, 0.0
    %v400 = vmax.f32 %v346, 0.0
    %v401 = vmax.f32 %v351, 0.0
    %v402 = vmax.f32 %v354, 0.0
    %v403 = vmax.f32 %v359, 0.0
    %v404 = vmax.f32 %v362, 0.0
    %v405 = vmax.f32 %v367, 0.0
    %v406 = vmax.f32 %v370, 0.0
    %v407 = vmax.f32 %v375, 0.0
    %v408 = vmax.f32 %v378, 0.0
    %v409 = vmax.f32 %v383, 0.0
    %v410 = vmax.f32 %v386, 0.0
    %v411 = vmax.f32 %v391, 0.0
    %v412 = vmax.f32 %v394, 0.0
    %v413 = vld [vmem:[#allocation6] sm:$0xf]
    %v414 = vld [vmem:[#allocation6 + $0x4] sm:$0xf]
    %v415 = vld [vmem:[#allocation6 + $0x8] sm:$0xf]
    %v416 = vld [vmem:[#allocation6 + $0xc] sm:$0xf]
    %v417 = vld [vmem:[#allocation6 + $0x10] sm:$0xf]
    %v418 = vld [vmem:[#allocation6 + $0x14] sm:$0xf]
    %v419 = vld [vmem:[#allocation6 + $0x18] sm:$0xf]
    %v420 = vld [vmem:[#allocation6 + $0x1c] sm:$0xf]
    %v421 = vld [vmem:[#allocation6 + $0x20] sm:$0xf]
    %v422 = vld [vmem:[#allocation6 + $0x24] sm:$0xf]
    %v423 = vld [vmem:[#allocation6 + $0x28] sm:$0xf]
    %v424 = vld [vmem:[#allocation6 + $0x2c] sm:$0xf]
    %v425 = vld [vmem:[#allocation6 + $0x30] sm:$0xf]
    %v426 = vld [vmem:[#allocation6 + $0x34] sm:$0xf]
    %v427 = vld [vmem:[#allocation6 + $0x38] sm:$0xf]
    %v428 = vld [vmem:[#allocation6 + $0x3c] sm:$0xf]
    %v429 = vpack.c.bf16 %v398, %v397
    %v430 = vpack.c.bf16 %v400, %v399
    %v431 = vpack.c.bf16 %v402, %v401
    %v432 = vpack.c.bf16 %v404, %v403
    %v433 = vpack.c.bf16 %v406, %v405
    %v434 = vpack.c.bf16 %v408, %v407
    %v435 = vpack.c.bf16 %v410, %v409
    %v436 = vpack.c.bf16 %v412, %v411
    %v437 = vld [vmem:[#allocation7] sm:$0xff]
    %v438 = vld [vmem:[#allocation7 + $0x8] sm:$0xff]
    %v439 = vld [vmem:[#allocation7 + $0x10] sm:$0xff]
    %v440 = vld [vmem:[#allocation7 + $0x18] sm:$0xff]
    %v441 = vld [vmem:[#allocation7 + $0x20] sm:$0xff]
    %v442 = vld [vmem:[#allocation7 + $0x28] sm:$0xff]
    %v443 = vld [vmem:[#allocation7 + $0x30] sm:$0xff]
    %v444 = vld [vmem:[#allocation7 + $0x38] sm:$0xff]
    %v445 = vld [vmem:[#allocation7 + $0x40] sm:$0xff]
    %v446 = vld [vmem:[#allocation7 + $0x48] sm:$0xff]
    %v447 = vld [vmem:[#allocation7 + $0x50] sm:$0xff]
    %v448 = vld [vmem:[#allocation7 + $0x58] sm:$0xff]
    %v449 = vld [vmem:[#allocation7 + $0x60] sm:$0xff]
    %v450 = vld [vmem:[#allocation7 + $0x68] sm:$0xff]
    %v451 = vld [vmem:[#allocation7 + $0x70] sm:$0xff]
    %v452 = vld [vmem:[#allocation7 + $0x78] sm:$0xff]
    %454 = vset.pattern.permute.xlu0 0
    %455 = vperm.xlu0 %454, %v437
    %v456 = vpop.permute.xlu0 %455
    %459 = vset.pattern.permute.xlu0 0
    %460 = vperm.xlu0 %459, %v438
    %v461 = vpop.permute.xlu0 %460
    %464 = vset.pattern.permute.xlu0 0
    %465 = vperm.xlu0 %464, %v439
    %v466 = vpop.permute.xlu0 %465
    %469 = vset.pattern.permute.xlu0 0
    %470 = vperm.xlu0 %469, %v440
    %v471 = vpop.permute.xlu0 %470
    %474 = vset.pattern.permute.xlu0 0
    %475 = vperm.xlu0 %474, %v441
    %v476 = vpop.permute.xlu0 %475
    %479 = vset.pattern.permute.xlu0 0
    %480 = vperm.xlu0 %479, %v442
    %v481 = vpop.permute.xlu0 %480
    %484 = vset.pattern.permute.xlu0 0
    %485 = vperm.xlu0 %484, %v443
    %v486 = vpop.permute.xlu0 %485
    %489 = vset.pattern.permute.xlu0 0
    %490 = vperm.xlu0 %489, %v444
    %v491 = vpop.permute.xlu0 %490
    %494 = vset.pattern.permute.xlu0 0
    %495 = vperm.xlu0 %494, %v445
    %v496 = vpop.permute.xlu0 %495
    %499 = vset.pattern.permute.xlu0 0
    %500 = vperm.xlu0 %499, %v446
    %v501 = vpop.permute.xlu0 %500
    %504 = vset.pattern.permute.xlu0 0
    %505 = vperm.xlu0 %504, %v447
    %v506 = vpop.permute.xlu0 %505
    %509 = vset.pattern.permute.xlu0 0
    %510 = vperm.xlu0 %509, %v448
    %v511 = vpop.permute.xlu0 %510
    %514 = vset.pattern.permute.xlu0 0
    %515 = vperm.xlu0 %514, %v449
    %v516 = vpop.permute.xlu0 %515
    %519 = vset.pattern.permute.xlu0 0
    %520 = vperm.xlu0 %519, %v450
    %v521 = vpop.permute.xlu0 %520
    %524 = vset.pattern.permute.xlu0 0
    %525 = vperm.xlu0 %524, %v451
    %v526 = vpop.permute.xlu0 %525
    %529 = vset.pattern.permute.xlu0 0
    %530 = vperm.xlu0 %529, %v452
    %v531 = vpop.permute.xlu0 %530
    %v549 = vunpack.c.l.b16 %v413
    %v550 = vunpack.c.l.b16 %v414
    %v551 = vunpack.c.l.b16 %v415
    %v552 = vunpack.c.l.b16 %v416
    %v553 = vunpack.c.l.b16 %v417
    %v554 = vunpack.c.l.b16 %v418
    %v555 = vunpack.c.l.b16 %v419
    %v556 = vunpack.c.l.b16 %v420
    %v557 = vunpack.c.l.b16 %v421
    %v558 = vunpack.c.l.b16 %v422
    %v559 = vunpack.c.l.b16 %v423
    %v560 = vunpack.c.l.b16 %v424
    %v561 = vunpack.c.l.b16 %v425
    %v562 = vunpack.c.l.b16 %v426
    %v563 = vunpack.c.l.b16 %v427
    %v564 = vunpack.c.l.b16 %v428
    %v565 = vpack.c.b16 %v550, %v549
    %v566 = vpack.c.b16 %v552, %v551
    %v567 = vpack.c.b16 %v554, %v553
    %v568 = vpack.c.b16 %v556, %v555
    %v569 = vpack.c.b16 %v558, %v557
    %v570 = vpack.c.b16 %v560, %v559
    %v571 = vpack.c.b16 %v562, %v561
    %v572 = vpack.c.b16 %v564, %v563
    %581 = vmatprep.subr.bf16.mxu0 0
    %582 = vmatpush1.bf16.msra.mxu0 %v436
    %583 = vmatprep.subr.bf16.mxu0 0
    %584 = vmatpush1.bf16.msra.mxu0 %v435
    %585 = vmatprep.subr.bf16.mxu0 0
    %586 = vmatpush1.bf16.msra.mxu0 %v434
    %587 = vmatprep.subr.bf16.mxu0 0
    %588 = vmatpush1.bf16.msra.mxu0 %v433
    %589 = vmatprep.subr.bf16.mxu0 0
    %590 = vmatpush1.bf16.msra.mxu0 %v432
    %591 = vmatprep.subr.bf16.mxu0 0
    %592 = vmatpush1.bf16.msra.mxu0 %v431
    %593 = vmatprep.subr.bf16.mxu0 0
    %594 = vmatpush1.bf16.msra.mxu0 %v430
    %595 = vmatprep.subr.bf16.mxu0 0
    %596 = vmatpush1.bf16.msra.mxu0 %v429
    %597 = vmatprep.subr.bf16.mxu0 0
    %598 = vmatpush2.bf16.msra.mxu0 0
    %599 = vmatprep.subr.bf16.mxu0 0
    %600 = vmatpush2.bf16.msra.mxu0 0
    %601 = vmatprep.subr.bf16.mxu0 0
    %602 = vmatpush2.bf16.msra.mxu0 0
    %603 = vmatprep.subr.bf16.mxu0 0
    %604 = vmatpush2.bf16.msra.mxu0 0
    %605 = vmatprep.subr.bf16.mxu0 0
    %606 = vmatpush2.bf16.msra.mxu0 0
    %607 = vmatprep.subr.bf16.mxu0 0
    %608 = vmatpush2.bf16.msra.mxu0 0
    %609 = vmatprep.subr.bf16.mxu0 0
    %610 = vmatpush2.bf16.msra.mxu0 0
    %611 = vmatprep.subr.bf16.mxu0 0
    %612 = vmatpush2.bf16.msra.mxu0 0
    %613 = vmatprep.mubr.bf16.mxu0 0
    %614 = vmatmul.mubr.bf16.gmra.mxu0 %v565
    %v615 = vpop.f32.mrf.mxu0
    %v616 = vadd.f32 %v456, %v615
    %v617 = vpop.f32.mrf.mxu0
    %v618 = vpop.f32.mrf.mxu0
    %v619 = vadd.f32 %v461, %v618
    %v620 = vpop.f32.mrf.mxu0
    %621 = vmatprep.mubr.bf16.mxu0 0
    %622 = vmatmul.mubr.bf16.gmra.mxu0 %v566
    %v623 = vpop.f32.mrf.mxu0
    %v624 = vadd.f32 %v466, %v623
    %v625 = vpop.f32.mrf.mxu0
    %v626 = vpop.f32.mrf.mxu0
    %v627 = vadd.f32 %v471, %v626
    %v628 = vpop.f32.mrf.mxu0
    %629 = vmatprep.mubr.bf16.mxu0 0
    %630 = vmatmul.mubr.bf16.gmra.mxu0 %v567
    %v631 = vpop.f32.mrf.mxu0
    %v632 = vadd.f32 %v476, %v631
    %v633 = vpop.f32.mrf.mxu0
    %v634 = vpop.f32.mrf.mxu0
    %v635 = vadd.f32 %v481, %v634
    %v636 = vpop.f32.mrf.mxu0
    %637 = vmatprep.mubr.bf16.mxu0 0
    %638 = vmatmul.mubr.bf16.gmra.mxu0 %v568
    %v639 = vpop.f32.mrf.mxu0
    %v640 = vadd.f32 %v486, %v639
    %v641 = vpop.f32.mrf.mxu0
    %v642 = vpop.f32.mrf.mxu0
    %v643 = vadd.f32 %v491, %v642
    %v644 = vpop.f32.mrf.mxu0
    %645 = vmatprep.mubr.bf16.mxu0 0
    %646 = vmatmul.mubr.bf16.gmra.mxu0 %v569
    %v647 = vpop.f32.mrf.mxu0
    %v648 = vadd.f32 %v496, %v647
    %v649 = vpop.f32.mrf.mxu0
    %v650 = vpop.f32.mrf.mxu0
    %v651 = vadd.f32 %v501, %v650
    %v652 = vpop.f32.mrf.mxu0
    %653 = vmatprep.mubr.bf16.mxu0 0
    %654 = vmatmul.mubr.bf16.gmra.mxu0 %v570
    %v655 = vpop.f32.mrf.mxu0
    %v656 = vadd.f32 %v506, %v655
    %v657 = vpop.f32.mrf.mxu0
    %v658 = vpop.f32.mrf.mxu0
    %v659 = vadd.f32 %v511, %v658
    %v660 = vpop.f32.mrf.mxu0
    %661 = vmatprep.mubr.bf16.mxu0 0
    %662 = vmatmul.mubr.bf16.gmra.mxu0 %v571
    %v663 = vpop.f32.mrf.mxu0
    %v664 = vadd.f32 %v516, %v663
    %v665 = vpop.f32.mrf.mxu0
    %v666 = vpop.f32.mrf.mxu0
    %v667 = vadd.f32 %v521, %v666
    %v668 = vpop.f32.mrf.mxu0
    %669 = vmatprep.mubr.bf16.mxu0 0
    %670 = vmatmul.mubr.bf16.gmra.mxu0 %v572
    %v671 = vpop.f32.mrf.mxu0
    %v672 = vadd.f32 %v526, %v671
    %v673 = vpop.f32.mrf.mxu0
    %v674 = vpop.f32.mrf.mxu0
    %v675 = vadd.f32 %v531, %v674
    %v676 = vpop.f32.mrf.mxu0
    %677 = vdwg.mxu0
    %v678 = vmax.f32 %v616, 0.0
    %v679 = vmax.f32 %v619, 0.0
    %v680 = vmax.f32 %v624, 0.0
    %v681 = vmax.f32 %v627, 0.0
    %v682 = vmax.f32 %v632, 0.0
    %v683 = vmax.f32 %v635, 0.0
    %v684 = vmax.f32 %v640, 0.0
    %v685 = vmax.f32 %v643, 0.0
    %v686 = vmax.f32 %v648, 0.0
    %v687 = vmax.f32 %v651, 0.0
    %v688 = vmax.f32 %v656, 0.0
    %v689 = vmax.f32 %v659, 0.0
    %v690 = vmax.f32 %v664, 0.0
    %v691 = vmax.f32 %v667, 0.0
    %v692 = vmax.f32 %v672, 0.0
    %v693 = vmax.f32 %v675, 0.0
    %v694 = vld [vmem:[#allocation9] sm:$0xf]
    %v695 = vld [vmem:[#allocation9 + $0x4] sm:$0xf]
    %v696 = vld [vmem:[#allocation9 + $0x8] sm:$0xf]
    %v697 = vld [vmem:[#allocation9 + $0xc] sm:$0xf]
    %v698 = vld [vmem:[#allocation9 + $0x10] sm:$0xf]
    %v699 = vld [vmem:[#allocation9 + $0x14] sm:$0xf]
    %v700 = vld [vmem:[#allocation9 + $0x18] sm:$0xf]
    %v701 = vld [vmem:[#allocation9 + $0x1c] sm:$0xf]
    %v702 = vld [vmem:[#allocation9 + $0x20] sm:$0xf]
    %v703 = vld [vmem:[#allocation9 + $0x24] sm:$0xf]
    %v704 = vld [vmem:[#allocation9 + $0x28] sm:$0xf]
    %v705 = vld [vmem:[#allocation9 + $0x2c] sm:$0xf]
    %v706 = vld [vmem:[#allocation9 + $0x30] sm:$0xf]
    %v707 = vld [vmem:[#allocation9 + $0x34] sm:$0xf]
    %v708 = vld [vmem:[#allocation9 + $0x38] sm:$0xf]
    %v709 = vld [vmem:[#allocation9 + $0x3c] sm:$0xf]
    %v710 = vpack.c.bf16 %v679, %v678
    %v711 = vpack.c.bf16 %v681, %v680
    %v712 = vpack.c.bf16 %v683, %v682
    %v713 = vpack.c.bf16 %v685, %v684
    %v714 = vpack.c.bf16 %v687, %v686
    %v715 = vpack.c.bf16 %v689, %v688
    %v716 = vpack.c.bf16 %v691, %v690
    %v717 = vpack.c.bf16 %v693, %v692
    %v718 = vld [vmem:[#allocation10] sm:$0xff]
    %v719 = vld [vmem:[#allocation10 + $0x8] sm:$0xff]
    %v720 = vld [vmem:[#allocation10 + $0x10] sm:$0xff]
    %v721 = vld [vmem:[#allocation10 + $0x18] sm:$0xff]
    %v722 = vld [vmem:[#allocation10 + $0x20] sm:$0xff]
    %v723 = vld [vmem:[#allocation10 + $0x28] sm:$0xff]
    %v724 = vld [vmem:[#allocation10 + $0x30] sm:$0xff]
    %v725 = vld [vmem:[#allocation10 + $0x38] sm:$0xff]
    %v726 = vld [vmem:[#allocation10 + $0x40] sm:$0xff]
    %v727 = vld [vmem:[#allocation10 + $0x48] sm:$0xff]
    %v728 = vld [vmem:[#allocation10 + $0x50] sm:$0xff]
    %v729 = vld [vmem:[#allocation10 + $0x58] sm:$0xff]
    %v730 = vld [vmem:[#allocation10 + $0x60] sm:$0xff]
    %v731 = vld [vmem:[#allocation10 + $0x68] sm:$0xff]
    %v732 = vld [vmem:[#allocation10 + $0x70] sm:$0xff]
    %v733 = vld [vmem:[#allocation10 + $0x78] sm:$0xff]
    %735 = vset.pattern.permute.xlu0 0
    %736 = vperm.xlu0 %735, %v718
    %v737 = vpop.permute.xlu0 %736
    %740 = vset.pattern.permute.xlu0 0
    %741 = vperm.xlu0 %740, %v719
    %v742 = vpop.permute.xlu0 %741
    %745 = vset.pattern.permute.xlu0 0
    %746 = vperm.xlu0 %745, %v720
    %v747 = vpop.permute.xlu0 %746
    %750 = vset.pattern.permute.xlu0 0
    %751 = vperm.xlu0 %750, %v721
    %v752 = vpop.permute.xlu0 %751
    %755 = vset.pattern.permute.xlu0 0
    %756 = vperm.xlu0 %755, %v722
    %v757 = vpop.permute.xlu0 %756
    %760 = vset.pattern.permute.xlu0 0
    %761 = vperm.xlu0 %760, %v723
    %v762 = vpop.permute.xlu0 %761
    %765 = vset.pattern.permute.xlu0 0
    %766 = vperm.xlu0 %765, %v724
    %v767 = vpop.permute.xlu0 %766
    %770 = vset.pattern.permute.xlu0 0
    %771 = vperm.xlu0 %770, %v725
    %v772 = vpop.permute.xlu0 %771
    %775 = vset.pattern.permute.xlu0 0
    %776 = vperm.xlu0 %775, %v726
    %v777 = vpop.permute.xlu0 %776
    %780 = vset.pattern.permute.xlu0 0
    %781 = vperm.xlu0 %780, %v727
    %v782 = vpop.permute.xlu0 %781
    %785 = vset.pattern.permute.xlu0 0
    %786 = vperm.xlu0 %785, %v728
    %v787 = vpop.permute.xlu0 %786
    %790 = vset.pattern.permute.xlu0 0
    %791 = vperm.xlu0 %790, %v729
    %v792 = vpop.permute.xlu0 %791
    %795 = vset.pattern.permute.xlu0 0
    %796 = vperm.xlu0 %795, %v730
    %v797 = vpop.permute.xlu0 %796
    %800 = vset.pattern.permute.xlu0 0
    %801 = vperm.xlu0 %800, %v731
    %v802 = vpop.permute.xlu0 %801
    %805 = vset.pattern.permute.xlu0 0
    %806 = vperm.xlu0 %805, %v732
    %v807 = vpop.permute.xlu0 %806
    %810 = vset.pattern.permute.xlu0 0
    %811 = vperm.xlu0 %810, %v733
    %v812 = vpop.permute.xlu0 %811
    %v830 = vunpack.c.l.b16 %v694
    %v831 = vunpack.c.l.b16 %v695
    %v832 = vunpack.c.l.b16 %v696
    %v833 = vunpack.c.l.b16 %v697
    %v834 = vunpack.c.l.b16 %v698
    %v835 = vunpack.c.l.b16 %v699
    %v836 = vunpack.c.l.b16 %v700
    %v837 = vunpack.c.l.b16 %v701
    %v838 = vunpack.c.l.b16 %v702
    %v839 = vunpack.c.l.b16 %v703
    %v840 = vunpack.c.l.b16 %v704
    %v841 = vunpack.c.l.b16 %v705
    %v842 = vunpack.c.l.b16 %v706
    %v843 = vunpack.c.l.b16 %v707
    %v844 = vunpack.c.l.b16 %v708
    %v845 = vunpack.c.l.b16 %v709
    %v846 = vpack.c.b16 %v831, %v830
    %v847 = vpack.c.b16 %v833, %v832
    %v848 = vpack.c.b16 %v835, %v834
    %v849 = vpack.c.b16 %v837, %v836
    %v850 = vpack.c.b16 %v839, %v838
    %v851 = vpack.c.b16 %v841, %v840
    %v852 = vpack.c.b16 %v843, %v842
    %v853 = vpack.c.b16 %v845, %v844
    %862 = vmatprep.subr.bf16.mxu0 0
    %863 = vmatpush1.bf16.msra.mxu0 %v717
    %864 = vmatprep.subr.bf16.mxu0 0
    %865 = vmatpush1.bf16.msra.mxu0 %v716
    %866 = vmatprep.subr.bf16.mxu0 0
    %867 = vmatpush1.bf16.msra.mxu0 %v715
    %868 = vmatprep.subr.bf16.mxu0 0
    %869 = vmatpush1.bf16.msra.mxu0 %v714
    %870 = vmatprep.subr.bf16.mxu0 0
    %871 = vmatpush1.bf16.msra.mxu0 %v713
    %872 = vmatprep.subr.bf16.mxu0 0
    %873 = vmatpush1.bf16.msra.mxu0 %v712
    %874 = vmatprep.subr.bf16.mxu0 0
    %875 = vmatpush1.bf16.msra.mxu0 %v711
    %876 = vmatprep.subr.bf16.mxu0 0
    %877 = vmatpush1.bf16.msra.mxu0 %v710
    %878 = vmatprep.subr.bf16.mxu0 0
    %879 = vmatpush2.bf16.msra.mxu0 0
    %880 = vmatprep.subr.bf16.mxu0 0
    %881 = vmatpush2.bf16.msra.mxu0 0
    %882 = vmatprep.subr.bf16.mxu0 0
    %883 = vmatpush2.bf16.msra.mxu0 0
    %884 = vmatprep.subr.bf16.mxu0 0
    %885 = vmatpush2.bf16.msra.mxu0 0
    %886 = vmatprep.subr.bf16.mxu0 0
    %887 = vmatpush2.bf16.msra.mxu0 0
    %888 = vmatprep.subr.bf16.mxu0 0
    %889 = vmatpush2.bf16.msra.mxu0 0
    %890 = vmatprep.subr.bf16.mxu0 0
    %891 = vmatpush2.bf16.msra.mxu0 0
    %892 = vmatprep.subr.bf16.mxu0 0
    %893 = vmatpush2.bf16.msra.mxu0 0
    %894 = vmatprep.mubr.bf16.mxu0 0
    %895 = vmatmul.mubr.bf16.gmra.mxu0 %v846
    %v896 = vpop.f32.mrf.mxu0
    %v897 = vadd.f32 %v737, %v896
    %v898 = vpop.f32.mrf.mxu0
    %v899 = vpop.f32.mrf.mxu0
    %v900 = vadd.f32 %v742, %v899
    %v901 = vpop.f32.mrf.mxu0
    %902 = vmatprep.mubr.bf16.mxu0 0
    %903 = vmatmul.mubr.bf16.gmra.mxu0 %v847
    %v904 = vpop.f32.mrf.mxu0
    %v905 = vadd.f32 %v747, %v904
    %v906 = vpop.f32.mrf.mxu0
    %v907 = vpop.f32.mrf.mxu0
    %v908 = vadd.f32 %v752, %v907
    %v909 = vpop.f32.mrf.mxu0
    %910 = vmatprep.mubr.bf16.mxu0 0
    %911 = vmatmul.mubr.bf16.gmra.mxu0 %v848
    %v912 = vpop.f32.mrf.mxu0
    %v913 = vadd.f32 %v757, %v912
    %v914 = vpop.f32.mrf.mxu0
    %v915 = vpop.f32.mrf.mxu0
    %v916 = vadd.f32 %v762, %v915
    %v917 = vpop.f32.mrf.mxu0
    %918 = vmatprep.mubr.bf16.mxu0 0
    %919 = vmatmul.mubr.bf16.gmra.mxu0 %v849
    %v920 = vpop.f32.mrf.mxu0
    %v921 = vadd.f32 %v767, %v920
    %v922 = vpop.f32.mrf.mxu0
    %v923 = vpop.f32.mrf.mxu0
    %v924 = vadd.f32 %v772, %v923
    %v925 = vpop.f32.mrf.mxu0
    %926 = vmatprep.mubr.bf16.mxu0 0
    %927 = vmatmul.mubr.bf16.gmra.mxu0 %v850
    %v928 = vpop.f32.mrf.mxu0
    %v929 = vadd.f32 %v777, %v928
    %v930 = vpop.f32.mrf.mxu0
    %v931 = vpop.f32.mrf.mxu0
    %v932 = vadd.f32 %v782, %v931
    %v933 = vpop.f32.mrf.mxu0
    %934 = vmatprep.mubr.bf16.mxu0 0
    %935 = vmatmul.mubr.bf16.gmra.mxu0 %v851
    %v936 = vpop.f32.mrf.mxu0
    %v937 = vadd.f32 %v787, %v936
    %v938 = vpop.f32.mrf.mxu0
    %v939 = vpop.f32.mrf.mxu0
    %v940 = vadd.f32 %v792, %v939
    %v941 = vpop.f32.mrf.mxu0
    %942 = vmatprep.mubr.bf16.mxu0 0
    %943 = vmatmul.mubr.bf16.gmra.mxu0 %v852
    %v944 = vpop.f32.mrf.mxu0
    %v945 = vadd.f32 %v797, %v944
    %v946 = vpop.f32.mrf.mxu0
    %v947 = vpop.f32.mrf.mxu0
    %v948 = vadd.f32 %v802, %v947
    %v949 = vpop.f32.mrf.mxu0
    %950 = vmatprep.mubr.bf16.mxu0 0
    %951 = vmatmul.mubr.bf16.gmra.mxu0 %v853
    %v952 = vpop.f32.mrf.mxu0
    %v953 = vadd.f32 %v807, %v952
    %v954 = vpop.f32.mrf.mxu0
    %v955 = vpop.f32.mrf.mxu0
    %v956 = vadd.f32 %v812, %v955
    %v957 = vpop.f32.mrf.mxu0
    %958 = vdwg.mxu0
    %v959 = vmax.f32 %v897, 0.0
    %v960 = vmax.f32 %v900, 0.0
    %v961 = vmax.f32 %v905, 0.0
    %v962 = vmax.f32 %v908, 0.0
    %v963 = vmax.f32 %v913, 0.0
    %v964 = vmax.f32 %v916, 0.0
    %v965 = vmax.f32 %v921, 0.0
    %v966 = vmax.f32 %v924, 0.0
    %v967 = vmax.f32 %v929, 0.0
    %v968 = vmax.f32 %v932, 0.0
    %v969 = vmax.f32 %v937, 0.0
    %v970 = vmax.f32 %v940, 0.0
    %v971 = vmax.f32 %v945, 0.0
    %v972 = vmax.f32 %v948, 0.0
    %v973 = vmax.f32 %v953, 0.0
    %v974 = vmax.f32 %v956, 0.0
    %v975 = vld [vmem:[%s7] sm:$0xf]
    %v976 = vld [vmem:[%s7 + $0x4] sm:$0xf]
    %v977 = vpack.c.bf16 %v960, %v959
    %v978 = vpack.c.bf16 %v962, %v961
    %v979 = vpack.c.bf16 %v964, %v963
    %v980 = vpack.c.bf16 %v966, %v965
    %v981 = vpack.c.bf16 %v968, %v967
    %v982 = vpack.c.bf16 %v970, %v969
    %v983 = vpack.c.bf16 %v972, %v971
    %v984 = vpack.c.bf16 %v974, %v973
    %v985 = vld [vmem:[%s8] sm:$0xff]
    %v986 = vld [vmem:[%s8 + $0x8] sm:$0xff]
    %988 = vset.pattern.permute.xlu0 0
    %989 = vperm.xlu0 %988, %v985
    %v990 = vpop.permute.xlu0 %989
    %993 = vset.pattern.permute.xlu0 0
    %994 = vperm.xlu0 %993, %v986
    %v995 = vpop.permute.xlu0 %994
    %v999 = vunpack.c.l.b16 %v975
    %v1000 = vunpack.c.l.b16 %v976
    %v1001 = vpack.c.b16 %v1000, %v999
    %1003 = vmatprep.subr.bf16.mxu0 0
    %1004 = vmatpush1.bf16.msra.mxu0 %v984
    %1005 = vmatprep.subr.bf16.mxu0 0
    %1006 = vmatpush1.bf16.msra.mxu0 %v983
    %1007 = vmatprep.subr.bf16.mxu0 0
    %1008 = vmatpush1.bf16.msra.mxu0 %v982
    %1009 = vmatprep.subr.bf16.mxu0 0
    %1010 = vmatpush1.bf16.msra.mxu0 %v981
    %1011 = vmatprep.subr.bf16.mxu0 0
    %1012 = vmatpush1.bf16.msra.mxu0 %v980
    %1013 = vmatprep.subr.bf16.mxu0 0
    %1014 = vmatpush1.bf16.msra.mxu0 %v979
    %1015 = vmatprep.subr.bf16.mxu0 0
    %1016 = vmatpush1.bf16.msra.mxu0 %v978
    %1017 = vmatprep.subr.bf16.mxu0 0
    %1018 = vmatpush1.bf16.msra.mxu0 %v977
    %1019 = vmatprep.subr.bf16.mxu0 0
    %1020 = vmatpush2.bf16.msra.mxu0 0
    %1021 = vmatprep.subr.bf16.mxu0 0
    %1022 = vmatpush2.bf16.msra.mxu0 0
    %1023 = vmatprep.subr.bf16.mxu0 0
    %1024 = vmatpush2.bf16.msra.mxu0 0
    %1025 = vmatprep.subr.bf16.mxu0 0
    %1026 = vmatpush2.bf16.msra.mxu0 0
    %1027 = vmatprep.subr.bf16.mxu0 0
    %1028 = vmatpush2.bf16.msra.mxu0 0
    %1029 = vmatprep.subr.bf16.mxu0 0
    %1030 = vmatpush2.bf16.msra.mxu0 0
    %1031 = vmatprep.subr.bf16.mxu0 0
    %1032 = vmatpush2.bf16.msra.mxu0 0
    %1033 = vmatprep.subr.bf16.mxu0 0
    %1034 = vmatpush2.bf16.msra.mxu0 0
    %1035 = vmatprep.mubr.bf16.mxu0 0
    %1036 = vmatmul.mubr.bf16.gmra.mxu0 %v1001
    %v1037 = vpop.f32.mrf.mxu0
    %v1038 = vadd.f32 %v990, %v1037
    %v1039 = vpop.f32.mrf.mxu0
    %v1040 = vpop.f32.mrf.mxu0
    %v1041 = vadd.f32 %v995, %v1040
    %v1042 = vpop.f32.mrf.mxu0
    %1043 = vdwg.mxu0
    %v1044 = vmax.f32 %v1038, %v1041
    %v1045 = vrot.slane %v1044, 4
    %v1046 = vmax.f32 %v1044, %v1045
    %v1047 = vrot.slane %v1046, 2
    %v1048 = vmax.f32 %v1046, %v1047
    %v1049 = vrot.slane %v1048, 1
    %v1050 = vmax.f32 %v1048, %v1049
    %v1051 = vsub.f32 %v1038, %v1050
    %v1052 = vsub.f32 %v1041, %v1050
    %v1053 = vmul.f32 %v1051, 1.442695
    %v1054 = vpow.pop %v1053
    %v1055 = vmul.f32 %v1052, 1.442695
    %v1056 = vpow.pop %v1055
    %v1057 = vadd.f32 %v1054, %v1056
    %v1058 = vrot.slane %v1057, 4
    %v1059 = vadd.f32 %v1057, %v1058
    %v1060 = vrot.slane %v1059, 2
    %v1061 = vadd.f32 %v1059, %v1060
    %v1062 = vrot.slane %v1061, 1
    %v1063 = vadd.f32 %v1061, %v1062
    %v1064 = vrcp.pop %v1063
    %v1065 = vmul.f32 %v1054, %v1064
    %v1066 = vmul.f32 %v1056, %v1064
    %1067 = vst [vmem:[%s9] sm:$0xff] %v1065
    %1068 = vst [vmem:[%s9 + $0x8] sm:$0xff] %v1066
    // Predicated region
    $region62: #{_lambda_.1} parent=1 // pred_check
      _
    $region63: #{_lambda_.1} parent=1 // pred_check_branch
      %1070 = sbr.rel (0) target = $region65
    $region64: #{_lambda_.1} parent=1 // pred_region
      _
    $region65: #{_lambda_.1} parent=1 // pred_fallthru
      _
    // Predicated region
    $region66: #{_lambda_.1} parent=1 // pred_check
      _
    $region67: #{_lambda_.1} parent=1 // pred_check_branch
      %1072 = sbr.rel (0) target = $region69
    $region68: #{_lambda_.1} parent=1 // pred_region
      _
    $region69: #{_lambda_.1} parent=1 // pred_fallthru
      _
    %1073 = vsyncpa [#allocation3], 1
    %1074 = vsyncpa [#allocation5], 1
    %1075 = vsyncpa [#allocation8], 1
    %1076 = vsyncpa [#allocation11], 1

</llo_original>
